<compile_context>
chip_gen: v5e
topology: v5e:2x2
jax: 0.10.0
libtpu: 0.0.40
codegen_flags: <defaults>
</compile_context>

<pallas_src>
import functools
import math

import jax
import jax.numpy as jnp
from jax.experimental import pallas as pl
from jax.experimental.pallas import tpu as pltpu


H0, H1, H2 = 128, 64, 32          # per-branch hidden widths (actor == critic)
LANES = 128                       # fused lane width for layers 1-3
W0_OUT = 2 * H0                   # fused layer-0 output width (actor | critic)
WR_ROWS = 2 * H0 + 2 * LANES      # stacked rows of fused layer-1/2/3 weights


def _round_up(x, m):
    return ((x + m - 1) // m) * m


# ----------------------------------------------------------------------------
# Kernel
# ----------------------------------------------------------------------------
def _actor_critic_kernel(x_ref, eps_ref, w0_ref, wr_ref, b_ref, out_ref,
                         *, A, sigma, logp_const):
    x = x_ref[...]            # [TB, S]
    eps = eps_ref[...]        # [TB, A]   (unpadded: only real lanes stream from HBM)
    b = b_ref[...]            # [8, 256]  bias slab

    # ---- fused layer 0: [TB, 256] = [actor_h0 | critic_h0] ----
    h = jnp.dot(x, w0_ref[...], preferred_element_type=jnp.float32) + b[0:1, :]
    h = jnp.maximum(h, 0.0)

    # ---- fused layer 1 (block-diagonal [256, 128]): [actor_h1 | critic_h1] ----
    h = jnp.dot(h, wr_ref[0:2 * H0, :],
                preferred_element_type=jnp.float32) + b[1:2, 0:LANES]
    h = jnp.maximum(h, 0.0)

    # ---- fused layer 2 (block-diagonal): lanes 0..31 actor, 32..63 critic ----
    h = jnp.dot(h, wr_ref[2 * H0:2 * H0 + LANES, :],
                preferred_element_type=jnp.float32) + b[2:3, 0:LANES]
    h = jnp.maximum(h, 0.0)

    # ---- fused heads: lanes 0..A-1 actor logits, lane A critic value ----
    z = jnp.dot(h, wr_ref[2 * H0 + LANES:2 * H0 + 2 * LANES, :],
                preferred_element_type=jnp.float32) + b[3:4, 0:LANES]

    z_act = z[:, 0:A]                 # actor logits   [TB, A]
    value = z[:, A:A + 1]             # critic value   [TB, 1]

    # exact, overflow-safe sigmoid: exp(-z) -> inf gives 1/inf == 0 (no NaN)
    mean = 1.0 / (1.0 + jnp.exp(-z_act))
    action = mean + sigma * eps

    # (action - mean)/sigma == eps exactly; sum over the A real lanes only
    maha = jnp.sum(eps * eps, axis=-1, keepdims=True)     # [TB, 1]
    logp = -0.5 * (maha + logp_const)                      # [TB, 1]

    # narrow, fully-written output block: [ action | logp | value ]  ([TB, A+2])
    out_ref[:, 0:A] = action
    out_ref[:, A:A + 1] = logp
    out_ref[:, A + 1:A + 2] = value


# ----------------------------------------------------------------------------
# Host-side packing (call ONCE, outside the rollout step)
# ----------------------------------------------------------------------------
def pack_params(params, state_dim, action_dim):
    """Pack 16 tensors into: w0 slab [S, 256], layer-1..3 slab [512, 128],
    bias slab [8, 256]. No zero lane-padding beyond the block-diagonal holes."""
    S, A = state_dim, action_dim
    assert A + 1 <= LANES, "action_dim too large for fused head packing"

    w0 = jnp.zeros((S, W0_OUT), jnp.float32)
    w0 = w0.at[:, 0:H0].set(params["aw0"])
    w0 = w0.at[:, H0:2 * H0].set(params["cw0"])

    wr = jnp.zeros((WR_ROWS, LANES), jnp.float32)
    # layer 1: block-diag [256, 128]
    wr = wr.at[0:H0, 0:H1].set(params["aw1"])
    wr = wr.at[H0:2 * H0, H1:2 * H1].set(params["cw1"])
    # layer 2: block-diag [128, 64] inside [128, 128]
    o2 = 2 * H0
    wr = wr.at[o2:o2 + H1, 0:H2].set(params["aw2"])
    wr = wr.at[o2 + H1:o2 + 2 * H1, H2:2 * H2].set(params["cw2"])
    # layer 3: actor head -> lanes 0..A-1, critic head -> lane A
    o3 = o2 + LANES
    wr = wr.at[o3:o3 + H2, 0:A].set(params["aw3"])
    wr = wr.at[o3 + H2:o3 + 2 * H2, A:A + 1].set(params["cw3"])

    b = jnp.zeros((8, W0_OUT), jnp.float32)
    b = b.at[0, 0:H0].set(params["ab0"][0]).at[0, H0:2 * H0].set(params["cb0"][0])
    b = b.at[1, 0:H1].set(params["ab1"][0]).at[1, H1:2 * H1].set(params["cb1"][0])
    b = b.at[2, 0:H2].set(params["ab2"][0]).at[2, H2:2 * H2].set(params["cb2"][0])
    b = b.at[3, 0:A].set(params["ab3"][0]).at[3, A:A + 1].set(params["cb3"][0])
    return w0, wr, b


# ----------------------------------------------------------------------------
# Wrapper
# ----------------------------------------------------------------------------
def _choose_tile(B, block_b):
    """Batch tile selection.

    * B <= 256: single block equal to the full batch (legal block shape, no
      host-side padding, no wasted extra grid step).
    * B > 256: multiple-of-8 tile, capped at block_b, sized so the grid has
      >= 2 steps (v7x shards the batch over both TensorCores); prefer a tile
      that divides B so the zero-pad input copy is skipped entirely.
    """
    if B <= 256:
        return B, B
    cap = max(8, min(block_b, _round_up((B + 1) // 2, 8)))
    for tb in range(cap, max(cap - 128, 7), -8):
        if B % tb == 0:
            return tb, B
    return cap, _round_up(B, cap)


def _resident_spec(shape):
    """Constant-index weight/bias block: VMEM-resident, single-buffered."""
    idx = lambda i: (0, 0)
    try:
        return pl.BlockSpec(shape, idx, pipeline_mode=pl.Buffered(1))
    except (AttributeError, TypeError):
        return pl.BlockSpec(shape, idx)


@functools.partial(jax.jit,
                   static_argnames=("action_dim", "exploration_param", "block_b"))
def actor_critic_forward(state, noise, w0_slab, wr_slab, b_slab, *,
                         action_dim, exploration_param, block_b=1024):
    """state: [B, S] f32, noise: [B, A] f32 (standard normal), slabs from pack_params."""
    B, S = state.shape
    A = action_dim
    OUT = A + 2
    sigma = float(exploration_param)
    logp_const = float(A * math.log(2.0 * math.pi) + 2.0 * A * math.log(sigma))

    TB, B_pad = _choose_tile(B, block_b)
    if B_pad != B:
        # ragged tail only: padded rows are computed then dropped
        state = jnp.zeros((B_pad, S), state.dtype).at[:B, :].set(state)
        noise = jnp.zeros((B_pad, A), noise.dtype).at[:B, :].set(noise)

    kernel = functools.partial(_actor_critic_kernel,
                               A=A, sigma=sigma, logp_const=logp_const)

    packed = pl.pallas_call(
        kernel,
        grid=(B_pad // TB,),
        in_specs=[
            pl.BlockSpec((TB, S), lambda i: (i, 0)),      # state tile (pipelined)
            pl.BlockSpec((TB, A), lambda i: (i, 0)),      # noise tile (pipelined)
            _resident_spec((S, W0_OUT)),                  # fused layer-0 weights
            _resident_spec((WR_ROWS, LANES)),             # fused layer-1..3 weights
            _resident_spec((8, W0_OUT)),                  # bias slab
        ],
        out_specs=pl.BlockSpec((TB, OUT), lambda i: (i, 0)),
        out_shape=jax.ShapeDtypeStruct((B_pad, OUT), jnp.float32),
        compiler_params=pltpu.CompilerParams(dimension_semantics=("parallel",)),
    )(state, noise, w0_slab, wr_slab, b_slab)

    action = packed[:B, :A]
    logp = packed[:B, A]
    value = packed[:B, A + 1:A + 2]
    return action, logp, value


# ----------------------------------------------------------------------------
# Init + pure-JAX reference (for correctness checking)
# ----------------------------------------------------------------------------
def init_params(key, state_dim, action_dim):
    """Deterministic, PyTorch-Linear-style uniform init. Weights stored [in, out]."""
    dims_actor = [(state_dim, 128), (128, 64), (64, 32), (32, action_dim)]
    dims_critic = [(state_dim, 128), (128, 64), (64, 32), (32, 1)]
    params = {}
    keys = jax.random.split(key, 16)
    ki = 0
    for prefix, dims in (("a", dims_actor), ("c", dims_critic)):
        for li, (din, dout) in enumerate(dims):
            bound = 1.0 / math.sqrt(din)
            w = jax.random.uniform(keys[ki], (din, dout), jnp.float32, -bound, bound)
            ki += 1
            b = jax.random.uniform(keys[ki], (1, dout), jnp.float32, -bound, bound)
            ki += 1
            params[f"{prefix}w{li}"] = w
            params[f"{prefix}b{li}"] = b
    return params


def reference_forward(state, noise, params, *, action_dim, exploration_param):
    sigma = float(exploration_param)
    hp = jax.lax.Precision.HIGHEST
    h = state
    for i in range(3):
        h = jnp.maximum(jnp.dot(h, params[f"aw{i}"], precision=hp) + params[f"ab{i}"], 0.0)
    mean = jax.nn.sigmoid(jnp.dot(h, params["aw3"], precision=hp) + params["ab3"])
    c = state
    for i in range(3):
        c = jnp.maximum(jnp.dot(c, params[f"cw{i}"], precision=hp) + params[f"cb{i}"], 0.0)
    value = jnp.dot(c, params["cw3"], precision=hp) + params["cb3"]
    action = mean + sigma * noise
    k = float(action_dim)
    maha = jnp.sum(noise * noise, axis=-1)
    logp = -0.5 * (maha + k * math.log(2.0 * math.pi) + 2.0 * k * math.log(sigma))
    return action, logp, value


if __name__ == "__main__":
    state_dim = 32
    action_dim = 4
    batch = 8
    exploration_param = 0.05

    key = jax.random.PRNGKey(0)
    k_params, k_state, k_noise = jax.random.split(key, 3)

    params = init_params(k_params, state_dim, action_dim)
    state = jax.random.normal(k_state, (batch, state_dim), jnp.float32)
    # standard-normal noise for dist.sample(): action = mean + sigma * eps
    noise = jax.random.normal(k_noise, (batch, action_dim), jnp.float32)

    # pack the 16 weight/bias tensors ONCE (hoisted out of the per-step path)
    w0_slab, wr_slab, b_slab = jax.block_until_ready(
        pack_params(params, state_dim, action_dim))

    action, logprob, value = actor_critic_forward(
        state, noise, w0_slab, wr_slab, b_slab,
        action_dim=action_dim, exploration_param=exploration_param,
    )
    jax.block_until_ready((action, logprob, value))

    assert action.shape == (batch, action_dim)
    assert logprob.shape == (batch,)
    assert value.shape == (batch, 1)

    # correctness check against a pure-JAX reference (loose tol for MXU f32 passes)
    ra, rl, rv = reference_forward(
        state, noise, params,
        action_dim=action_dim, exploration_param=exploration_param,
    )
    assert jnp.allclose(action, ra, atol=2e-2, rtol=2e-2)
    assert jnp.allclose(logprob, rl, atol=2e-2, rtol=2e-2)
    assert jnp.allclose(value, rv, atol=2e-2, rtol=2e-2)

    print("KERNEL_OK")
</pallas_src>

<mosaic_0001>
module attributes {stable_mosaic.version = 11 : i64} {
  func.func @_actor_critic_kernel(%arg0: i32, %arg1: memref<8x32xf32, #tpu.memory_space<vmem>>, %arg2: memref<8x4xf32, #tpu.memory_space<vmem>>, %arg3: memref<32x256xf32, #tpu.memory_space<vmem>>, %arg4: memref<512x128xf32, #tpu.memory_space<vmem>>, %arg5: memref<8x256xf32, #tpu.memory_space<vmem>>, %arg6: memref<8x6xf32, #tpu.memory_space<vmem>>) attributes {dimension_semantics = [#tpu.dimension_semantics<parallel>], iteration_bounds = array<i64: 1>, scalar_prefetch = 0 : i64, scratch_operands = 0 : i64, tpu.core_type = #tpu.core_type<tc>, window_params = [{transform_indices = @transform_0, window_bounds = array<i64: 8, 32>}, {transform_indices = @transform_1, window_bounds = array<i64: 8, 4>}, {pipeline_mode = #tpu.pipeline_mode<synchronous>, transform_indices = @transform_2, window_bounds = array<i64: 32, 256>}, {pipeline_mode = #tpu.pipeline_mode<synchronous>, transform_indices = @transform_3, window_bounds = array<i64: 512, 128>}, {pipeline_mode = #tpu.pipeline_mode<synchronous>, transform_indices = @transform_4, window_bounds = array<i64: 8, 256>}, {transform_indices = @transform_5, window_bounds = array<i64: 8, 6>}]} {
    %c0 = arith.constant 0 : index
    %c0_0 = arith.constant 0 : index
    %0 = vector.load %arg1[%c0, %c0_0] : memref<8x32xf32, #tpu.memory_space<vmem>>, vector<8x32xf32>
    %c0_1 = arith.constant 0 : index
    %c0_2 = arith.constant 0 : index
    %1 = vector.load %arg2[%c0_1, %c0_2] : memref<8x4xf32, #tpu.memory_space<vmem>>, vector<8x4xf32>
    %c0_3 = arith.constant 0 : index
    %c0_4 = arith.constant 0 : index
    %2 = vector.load %arg5[%c0_3, %c0_4] : memref<8x256xf32, #tpu.memory_space<vmem>>, vector<8x256xf32>
    %c0_5 = arith.constant 0 : index
    %c0_6 = arith.constant 0 : index
    %3 = vector.load %arg3[%c0_5, %c0_6] : memref<32x256xf32, #tpu.memory_space<vmem>>, vector<32x256xf32>
    %cst = arith.constant dense<0.000000e+00> : vector<8x256xf32>
    %4 = tpu.matmul %0, %3, %cst {dimension_numbers = #tpu.dot_dimension_numbers<[1], [0], [0], [1], [0, 0, 1, 1], [], []>} : vector<8x32xf32>, vector<32x256xf32>, vector<8x256xf32> -> vector<8x256xf32>
    %5 = vector.extract_strided_slice %2 {offsets = [0, 0], sizes = [1, 256], strides = [1, 1]} : vector<8x256xf32> to vector<1x256xf32>
    %6 = vector.broadcast %5 : vector<1x256xf32> to vector<8x256xf32>
    %7 = arith.addf %4, %6 : vector<8x256xf32>
    %cst_7 = arith.constant 0.000000e+00 : f32
    %8 = vector.broadcast %cst_7 : f32 to vector<8x256xf32>
    %9 = arith.maximumf %7, %8 : vector<8x256xf32>
    %c0_8 = arith.constant 0 : index
    %c0_9 = arith.constant 0 : index
    %10 = vector.load %arg4[%c0_8, %c0_9] : memref<512x128xf32, #tpu.memory_space<vmem>>, vector<256x128xf32>
    %cst_10 = arith.constant dense<0.000000e+00> : vector<8x128xf32>
    %11 = tpu.matmul %9, %10, %cst_10 {dimension_numbers = #tpu.dot_dimension_numbers<[1], [0], [0], [1], [0, 0, 1, 1], [], []>} : vector<8x256xf32>, vector<256x128xf32>, vector<8x128xf32> -> vector<8x128xf32>
    %12 = vector.extract_strided_slice %2 {offsets = [1, 0], sizes = [1, 128], strides = [1, 1]} : vector<8x256xf32> to vector<1x128xf32>
    %13 = vector.broadcast %12 : vector<1x128xf32> to vector<8x128xf32>
    %14 = arith.addf %11, %13 : vector<8x128xf32>
    %cst_11 = arith.constant 0.000000e+00 : f32
    %15 = vector.broadcast %cst_11 : f32 to vector<8x128xf32>
    %16 = arith.maximumf %14, %15 : vector<8x128xf32>
    %c256 = arith.constant 256 : index
    %c0_12 = arith.constant 0 : index
    %17 = vector.load %arg4[%c256, %c0_12] : memref<512x128xf32, #tpu.memory_space<vmem>>, vector<128x128xf32>
    %cst_13 = arith.constant dense<0.000000e+00> : vector<8x128xf32>
    %18 = tpu.matmul %16, %17, %cst_13 {dimension_numbers = #tpu.dot_dimension_numbers<[1], [0], [0], [1], [0, 0, 1, 1], [], []>} : vector<8x128xf32>, vector<128x128xf32>, vector<8x128xf32> -> vector<8x128xf32>
    %19 = vector.extract_strided_slice %2 {offsets = [2, 0], sizes = [1, 128], strides = [1, 1]} : vector<8x256xf32> to vector<1x128xf32>
    %20 = vector.broadcast %19 : vector<1x128xf32> to vector<8x128xf32>
    %21 = arith.addf %18, %20 : vector<8x128xf32>
    %cst_14 = arith.constant 0.000000e+00 : f32
    %22 = vector.broadcast %cst_14 : f32 to vector<8x128xf32>
    %23 = arith.maximumf %21, %22 : vector<8x128xf32>
    %c384 = arith.constant 384 : index
    %c0_15 = arith.constant 0 : index
    %24 = vector.load %arg4[%c384, %c0_15] : memref<512x128xf32, #tpu.memory_space<vmem>>, vector<128x128xf32>
    %cst_16 = arith.constant dense<0.000000e+00> : vector<8x128xf32>
    %25 = tpu.matmul %23, %24, %cst_16 {dimension_numbers = #tpu.dot_dimension_numbers<[1], [0], [0], [1], [0, 0, 1, 1], [], []>} : vector<8x128xf32>, vector<128x128xf32>, vector<8x128xf32> -> vector<8x128xf32>
    %26 = vector.extract_strided_slice %2 {offsets = [3, 0], sizes = [1, 128], strides = [1, 1]} : vector<8x256xf32> to vector<1x128xf32>
    %27 = vector.broadcast %26 : vector<1x128xf32> to vector<8x128xf32>
    %28 = arith.addf %25, %27 : vector<8x128xf32>
    %29 = vector.extract_strided_slice %28 {offsets = [0, 0], sizes = [8, 4], strides = [1, 1]} : vector<8x128xf32> to vector<8x4xf32>
    %30 = vector.extract_strided_slice %28 {offsets = [0, 4], sizes = [8, 1], strides = [1, 1]} : vector<8x128xf32> to vector<8x1xf32>
    %cst_17 = arith.constant 0.000000e+00 : f32
    %31 = vector.broadcast %cst_17 : f32 to vector<8x4xf32>
    %32 = arith.subf %31, %29 : vector<8x4xf32>
    %33 = math.exp %32 : vector<8x4xf32>
    %cst_18 = arith.constant 1.000000e+00 : f32
    %34 = vector.broadcast %cst_18 : f32 to vector<8x4xf32>
    %35 = arith.addf %34, %33 : vector<8x4xf32>
    %cst_19 = arith.constant 1.000000e+00 : f32
    %36 = vector.broadcast %cst_19 : f32 to vector<8x4xf32>
    %37 = arith.divf %36, %35 : vector<8x4xf32>
    %cst_20 = arith.constant 5.000000e-02 : f32
    %38 = vector.broadcast %cst_20 : f32 to vector<8x4xf32>
    %39 = arith.mulf %38, %1 : vector<8x4xf32>
    %40 = arith.addf %37, %39 : vector<8x4xf32>
    %41 = arith.mulf %1, %1 : vector<8x4xf32>
    %cst_21 = arith.constant dense<0.000000e+00> : vector<8xf32>
    %42 = vector.multi_reduction <add>, %41, %cst_21 [1] : vector<8x4xf32> to vector<8xf32>
    %43 = vector.shape_cast %42 : vector<8xf32> to vector<8x1xf32>
    %cst_22 = arith.constant -16.6143494 : f32
    %44 = vector.broadcast %cst_22 : f32 to vector<8x1xf32>
    %45 = arith.addf %43, %44 : vector<8x1xf32>
    %cst_23 = arith.constant -5.000000e-01 : f32
    %46 = vector.broadcast %cst_23 : f32 to vector<8x1xf32>
    %47 = arith.mulf %46, %45 : vector<8x1xf32>
    %c0_24 = arith.constant 0 : index
    %c0_25 = arith.constant 0 : index
    %48 = vector.load %arg6[%c0_24, %c0_25] : memref<8x6xf32, #tpu.memory_space<vmem>>, vector<8x4xf32>
    tpu.vector_store %arg6[%c0_24, %c0_25], %40 {strides = array<i32>} : memref<8x6xf32, #tpu.memory_space<vmem>>, vector<8x4xf32>,
    %c0_26 = arith.constant 0 : index
    %c4 = arith.constant 4 : index
    %49 = vector.load %arg6[%c0_26, %c4] : memref<8x6xf32, #tpu.memory_space<vmem>>, vector<8x1xf32>
    tpu.vector_store %arg6[%c0_26, %c4], %47 {strides = array<i32>} : memref<8x6xf32, #tpu.memory_space<vmem>>, vector<8x1xf32>,
    %c0_27 = arith.constant 0 : index
    %c5 = arith.constant 5 : index
    %50 = vector.load %arg6[%c0_27, %c5] : memref<8x6xf32, #tpu.memory_space<vmem>>, vector<8x1xf32>
    tpu.vector_store %arg6[%c0_27, %c5], %30 {strides = array<i32>} : memref<8x6xf32, #tpu.memory_space<vmem>>, vector<8x1xf32>,
    return
  }
  func.func @transform_0(%arg0: i32) -> (i32, i32) {
    %c0_i32 = arith.constant 0 : i32
    %c0_i32_0 = arith.constant 0 : i32
    return %arg0, %c0_i32 : i32, i32
  }
  func.func @transform_1(%arg0: i32) -> (i32, i32) {
    %c0_i32 = arith.constant 0 : i32
    %c0_i32_0 = arith.constant 0 : i32
    return %arg0, %c0_i32 : i32, i32
  }
  func.func @transform_2(%arg0: i32) -> (i32, i32) {
    %c0_i32 = arith.constant 0 : i32
    %c0_i32_0 = arith.constant 0 : i32
    %c0_i32_1 = arith.constant 0 : i32
    return %c0_i32, %c0_i32_0 : i32, i32
  }
  func.func @transform_3(%arg0: i32) -> (i32, i32) {
    %c0_i32 = arith.constant 0 : i32
    %c0_i32_0 = arith.constant 0 : i32
    %c0_i32_1 = arith.constant 0 : i32
    return %c0_i32, %c0_i32_0 : i32, i32
  }
  func.func @transform_4(%arg0: i32) -> (i32, i32) {
    %c0_i32 = arith.constant 0 : i32
    %c0_i32_0 = arith.constant 0 : i32
    %c0_i32_1 = arith.constant 0 : i32
    return %c0_i32, %c0_i32_0 : i32, i32
  }
  func.func @transform_5(%arg0: i32) -> (i32, i32) {
    %c0_i32 = arith.constant 0 : i32
    %c0_i32_0 = arith.constant 0 : i32
    return %arg0, %c0_i32 : i32, i32
  }
}

</mosaic_0001>

<llo_original>
// kernel: actor_critic_forward.1
$region0: #{actor_critic_forward.1}
  #allocation0 [shape = 'u32[]', space=smem, size = 0x4, offset = 0x4, fixed_abs, tag = 'smem constant byte address 0x4 - core index']
  #allocation1 [shape = 'u32[72,128]{1,0:T(1,128)}', space=vmem, size = 0x9000, scoped, tag = 'internal scratch']
  %s0 = inlined_call_operand.vmem [shape: f32[8,32], index: 0, kind: input, shape index: {}]
  %s1 = inlined_call_operand.vmem [shape: f32[8,4], index: 1, kind: input, shape index: {}]
  %s2 = inlined_call_operand.hbm [shape: f32[32,256], index: 2, kind: input, shape index: {}]
  %s3 = inlined_call_operand.hbm [shape: f32[512,128], index: 3, kind: input, shape index: {}]
  %s4 = inlined_call_operand.hbm [shape: f32[8,256], index: 4, kind: input, shape index: {}]
  %s5 = inlined_call_operand.vmem [shape: f32[8,6], index: 5, kind: output, shape index: {}]
  %s6 = sld [smem:[#allocation0]]
  $region42: #{actor_critic_forward.1} parent=0
    _
  %s8 = ssub.s32 1, %s6
  %s9 = scalar_select 0, %s8, %s6
  $region1: #{actor_critic_forward.1} parent=0
    #allocation2 [shape = 'u8[32768]{0}', space=vmem, size = 0x8000, scoped, tag = 'input window, operand 2, single buffered']
    #allocation3 [shape = 's32[1]{0}', space=sflag, size = 0x4, scoped, tag = 'scoped memory for actor_critic_forward.1']
    #allocation4 [shape = 'u8[262144]{0}', space=vmem, size = 0x40000, scoped, tag = 'input window, operand 3, single buffered']
    #allocation5 [shape = 's32[1]{0}', space=sflag, size = 0x4, scoped, tag = 'scoped memory for actor_critic_forward.1']
    #allocation6 [shape = 'u8[8192]{0}', space=vmem, size = 0x2000, scoped, tag = 'input window, operand 4, single buffered']
    %10 = vsyncpa [#allocation3], 0
    %11 = vsyncpa [#allocation5], 0
    // Predicated region
    $region2: #{actor_critic_forward.1} parent=1 // pred_check
      _
    $region3: #{actor_critic_forward.1} parent=1 // pred_check_branch
      %13 = sbr.rel (0) target = $region5
    $region4: #{actor_critic_forward.1} parent=1 // pred_region
      _
    $region5: #{actor_critic_forward.1} parent=1 // pred_fallthru
      _
    // Predicated region
    $region6: #{actor_critic_forward.1} parent=1 // pred_check
      _
    $region7: #{actor_critic_forward.1} parent=1 // pred_check_branch
      %15 = sbr.rel (0) target = $region9
    $region8: #{actor_critic_forward.1} parent=1 // pred_region
      _
    $region9: #{actor_critic_forward.1} parent=1 // pred_fallthru
      _
    // Predicated region
    $region10: #{actor_critic_forward.1} parent=1 // pred_check
      _
    $region11: #{actor_critic_forward.1} parent=1 // pred_check_branch
      %17 = sbr.rel (0) target = $region13
    $region12: #{actor_critic_forward.1} parent=1 // pred_region
      %19 = vsyncadd [#allocation3], 0
      %s20 = sshll.u32 %s2, 4
      %s21 = int_to_ptr.hbm [resolvable:$true] %s20
      %s22 = sshll.u32 [#allocation2], 4
      %s23 = int_to_ptr.vmem [resolvable:$true] %s22
      %28 = dma.hbm_to_vmem [thread:$0]  %s21, 1024, %s23, [#allocation3], 256, 256, 16
    $region13: #{actor_critic_forward.1} parent=1 // pred_fallthru
      _
    // Predicated region
    $region14: #{actor_critic_forward.1} parent=1 // pred_check
      _
    $region15: #{actor_critic_forward.1} parent=1 // pred_check_branch
      %30 = sbr.rel (0) target = $region17
    $region16: #{actor_critic_forward.1} parent=1 // pred_region
      %32 = vsyncadd [#allocation5], 0
      %s33 = sshll.u32 %s3, 4
      %s34 = int_to_ptr.hbm [resolvable:$true] %s33
      %s35 = sshll.u32 [#allocation4], 4
      %s36 = int_to_ptr.vmem [resolvable:$true] %s35
      %41 = dma.hbm_to_vmem [thread:$0]  %s34, 8192, %s36, [#allocation5], 128, 128, 8
    $region17: #{actor_critic_forward.1} parent=1 // pred_fallthru
      _
    // Predicated region
    $region18: #{actor_critic_forward.1} parent=1 // pred_check
      _
    $region19: #{actor_critic_forward.1} parent=1 // pred_check_branch
      %43 = sbr.rel (0) target = $region21
    $region20: #{actor_critic_forward.1} parent=1 // pred_region
      %45 = vsyncadd [#allocation5], 0
      %s47 = sshll.u32 %s4, 4
      %s48 = int_to_ptr.hbm [resolvable:$true] %s47
      %s49 = sshll.u32 [#allocation6], 4
      %s50 = int_to_ptr.vmem [resolvable:$true] %s49
      %52 = dma.hbm_to_vmem [thread:$0]  %s48, 256, %s50, [#allocation5]
    $region21: #{actor_critic_forward.1} parent=1 // pred_fallthru
      _
    // Predicated region
    $region22: #{actor_critic_forward.1} parent=1 // pred_check
      _
    $region23: #{actor_critic_forward.1} parent=1 // pred_check_branch
      %54 = sbr.rel (0) target = $region25
    $region24: #{actor_critic_forward.1} parent=1 // pred_region
      %56 = dma.done [#allocation3], 1024
    $region25: #{actor_critic_forward.1} parent=1 // pred_fallthru
      _
    // Predicated region
    $region26: #{actor_critic_forward.1} parent=1 // pred_check
      _
    $region27: #{actor_critic_forward.1} parent=1 // pred_check_branch
      %58 = sbr.rel (0) target = $region29
    $region28: #{actor_critic_forward.1} parent=1 // pred_region
      %60 = dma.done [#allocation5], 8192
    $region29: #{actor_critic_forward.1} parent=1 // pred_fallthru
      _
    // Predicated region
    $region30: #{actor_critic_forward.1} parent=1 // pred_check
      _
    $region31: #{actor_critic_forward.1} parent=1 // pred_check_branch
      %62 = sbr.rel (0) target = $region33
    $region32: #{actor_critic_forward.1} parent=1 // pred_region
      %64 = dma.done [#allocation5], 256
    $region33: #{actor_critic_forward.1} parent=1 // pred_fallthru
      _
    %v65 = vld [vmem:[%s0] sm:$0xff]
    %v66 = vld [vmem:[%s1] sm:$0xff]
    %v67 = vld [vmem:[#allocation6] sm:$0xff]
    %v68 = vld [vmem:[#allocation6 + $0x8] sm:$0xff]
    %v69 = vld [vmem:[#allocation2] sm:$0xff]
    %v70 = vld [vmem:[#allocation2 + $0x8] sm:$0xff]
    %v71 = vld [vmem:[#allocation2 + $0x10] sm:$0xff]
    %v72 = vld [vmem:[#allocation2 + $0x18] sm:$0xff]
    %v73 = vld [vmem:[#allocation2 + $0x20] sm:$0xff]
    %v74 = vld [vmem:[#allocation2 + $0x28] sm:$0xff]
    %v75 = vld [vmem:[#allocation2 + $0x30] sm:$0xff]
    %v76 = vld [vmem:[#allocation2 + $0x38] sm:$0xff]
    %v77 = vperm.slane %v67, 0
    %v78 = vperm.slane %v68, 0
    %vm79 = vcmask 261120
    %v81 = vsel %vm79, %v65, 0
    %83 = vmatpush.msra.mxu0 0.0
    %84 = vmatpush.msra.mxu0 0.0
    %85 = vmatpush.msra.mxu0 0.0
    %86 = vmatpush.msra.mxu0 0.0
    %87 = vmatpush.msra.mxu0 0.0
    %88 = vmatpush.msra.mxu0 0.0
    %89 = vmatpush.msra.mxu0 0.0
    %90 = vmatpush.msra.mxu0 0.0
    %91 = vmatpush.msra.mxu0 0.0
    %92 = vmatpush.msra.mxu0 0.0
    %93 = vmatpush.msra.mxu0 0.0
    %94 = vmatpush.msra.mxu0 0.0
    %95 = vmatpush.msra.mxu0 %v75
    %96 = vmatpush.msra.mxu0 %v73
    %97 = vmatpush.msra.mxu0 %v71
    %98 = vmatpush.msra.mxu0 %v69
    %99 = vmatmul.f32.gmra.mxu0 %v81
    %v100 = vpop.f32.mrf.mxu0
    %v101 = vadd.f32 %v77, %v100
    %102 = vdwg.mxu0
    %103 = vmatpush.msra.mxu0 0.0
    %104 = vmatpush.msra.mxu0 0.0
    %105 = vmatpush.msra.mxu0 0.0
    %106 = vmatpush.msra.mxu0 0.0
    %107 = vmatpush.msra.mxu0 0.0
    %108 = vmatpush.msra.mxu0 0.0
    %109 = vmatpush.msra.mxu0 0.0
    %110 = vmatpush.msra.mxu0 0.0
    %111 = vmatpush.msra.mxu0 0.0
    %112 = vmatpush.msra.mxu0 0.0
    %113 = vmatpush.msra.mxu0 0.0
    %114 = vmatpush.msra.mxu0 0.0
    %115 = vmatpush.msra.mxu0 %v76
    %116 = vmatpush.msra.mxu0 %v74
    %117 = vmatpush.msra.mxu0 %v72
    %118 = vmatpush.msra.mxu0 %v70
    %119 = vmatmul.f32.gmra.mxu0 %v81
    %v120 = vpop.f32.mrf.mxu0
    %v121 = vadd.f32 %v78, %v120
    %122 = vdwg.mxu0
    %v123 = vmax.f32 %v101, 0.0
    %v124 = vmax.f32 %v121, 0.0
    %v125 = vld [vmem:[#allocation4] sm:$0xff]
    %v126 = vld [vmem:[#allocation4 + $0x8] sm:$0xff]
    %v127 = vld [vmem:[#allocation4 + $0x10] sm:$0xff]
    %v128 = vld [vmem:[#allocation4 + $0x18] sm:$0xff]
    %v129 = vld [vmem:[#allocation4 + $0x20] sm:$0xff]
    %v130 = vld [vmem:[#allocation4 + $0x28] sm:$0xff]
    %v131 = vld [vmem:[#allocation4 + $0x30] sm:$0xff]
    %v132 = vld [vmem:[#allocation4 + $0x38] sm:$0xff]
    %v133 = vld [vmem:[#allocation4 + $0x40] sm:$0xff]
    %v134 = vld [vmem:[#allocation4 + $0x48] sm:$0xff]
    %v135 = vld [vmem:[#allocation4 + $0x50] sm:$0xff]
    %v136 = vld [vmem:[#allocation4 + $0x58] sm:$0xff]
    %v137 = vld [vmem:[#allocation4 + $0x60] sm:$0xff]
    %v138 = vld [vmem:[#allocation4 + $0x68] sm:$0xff]
    %v139 = vld [vmem:[#allocation4 + $0x70] sm:$0xff]
    %v140 = vld [vmem:[#allocation4 + $0x78] sm:$0xff]
    %v141 = vld [vmem:[#allocation4 + $0x80] sm:$0xff]
    %v142 = vld [vmem:[#allocation4 + $0x88] sm:$0xff]
    %v143 = vld [vmem:[#allocation4 + $0x90] sm:$0xff]
    %v144 = vld [vmem:[#allocation4 + $0x98] sm:$0xff]
    %v145 = vld [vmem:[#allocation4 + $0xa0] sm:$0xff]
    %v146 = vld [vmem:[#allocation4 + $0xa8] sm:$0xff]
    %v147 = vld [vmem:[#allocation4 + $0xb0] sm:$0xff]
    %v148 = vld [vmem:[#allocation4 + $0xb8] sm:$0xff]
    %v149 = vld [vmem:[#allocation4 + $0xc0] sm:$0xff]
    %v150 = vld [vmem:[#allocation4 + $0xc8] sm:$0xff]
    %v151 = vld [vmem:[#allocation4 + $0xd0] sm:$0xff]
    %v152 = vld [vmem:[#allocation4 + $0xd8] sm:$0xff]
    %v153 = vld [vmem:[#allocation4 + $0xe0] sm:$0xff]
    %v154 = vld [vmem:[#allocation4 + $0xe8] sm:$0xff]
    %v155 = vld [vmem:[#allocation4 + $0xf0] sm:$0xff]
    %v156 = vld [vmem:[#allocation4 + $0xf8] sm:$0xff]
    %v157 = vperm.slane %v67, 1
    %158 = vmatpush.msra.mxu0 %v140
    %159 = vmatpush.msra.mxu0 %v139
    %160 = vmatpush.msra.mxu0 %v138
    %161 = vmatpush.msra.mxu0 %v137
    %162 = vmatpush.msra.mxu0 %v136
    %163 = vmatpush.msra.mxu0 %v135
    %164 = vmatpush.msra.mxu0 %v134
    %165 = vmatpush.msra.mxu0 %v133
    %166 = vmatpush.msra.mxu0 %v132
    %167 = vmatpush.msra.mxu0 %v131
    %168 = vmatpush.msra.mxu0 %v130
    %169 = vmatpush.msra.mxu0 %v129
    %170 = vmatpush.msra.mxu0 %v128
    %171 = vmatpush.msra.mxu0 %v127
    %172 = vmatpush.msra.mxu0 %v126
    %173 = vmatpush.msra.mxu0 %v125
    %174 = vmatmul.f32.gmra.mxu0 %v123
    %v175 = vpop.f32.mrf.mxu0
    %v176 = vadd.f32 %v157, %v175
    %177 = vdwg.mxu0
    %178 = vmatpush.msra.mxu0 %v156
    %179 = vmatpush.msra.mxu0 %v155
    %180 = vmatpush.msra.mxu0 %v154
    %181 = vmatpush.msra.mxu0 %v153
    %182 = vmatpush.msra.mxu0 %v152
    %183 = vmatpush.msra.mxu0 %v151
    %184 = vmatpush.msra.mxu0 %v150
    %185 = vmatpush.msra.mxu0 %v149
    %186 = vmatpush.msra.mxu0 %v148
    %187 = vmatpush.msra.mxu0 %v147
    %188 = vmatpush.msra.mxu0 %v146
    %189 = vmatpush.msra.mxu0 %v145
    %190 = vmatpush.msra.mxu0 %v144
    %191 = vmatpush.msra.mxu0 %v143
    %192 = vmatpush.msra.mxu0 %v142
    %193 = vmatpush.msra.mxu0 %v141
    %194 = vmatmul.f32.gmra.mxu0 %v124
    %v195 = vpop.f32.mrf.mxu0
    %v196 = vadd.f32 %v176, %v195
    %197 = vdwg.mxu0
    %v198 = vmax.f32 %v196, 0.0
    %v199 = vld [vmem:[#allocation4 + $0x100] sm:$0xff]
    %v200 = vld [vmem:[#allocation4 + $0x108] sm:$0xff]
    %v201 = vld [vmem:[#allocation4 + $0x110] sm:$0xff]
    %v202 = vld [vmem:[#allocation4 + $0x118] sm:$0xff]
    %v203 = vld [vmem:[#allocation4 + $0x120] sm:$0xff]
    %v204 = vld [vmem:[#allocation4 + $0x128] sm:$0xff]
    %v205 = vld [vmem:[#allocation4 + $0x130] sm:$0xff]
    %v206 = vld [vmem:[#allocation4 + $0x138] sm:$0xff]
    %v207 = vld [vmem:[#allocation4 + $0x140] sm:$0xff]
    %v208 = vld [vmem:[#allocation4 + $0x148] sm:$0xff]
    %v209 = vld [vmem:[#allocation4 + $0x150] sm:$0xff]
    %v210 = vld [vmem:[#allocation4 + $0x158] sm:$0xff]
    %v211 = vld [vmem:[#allocation4 + $0x160] sm:$0xff]
    %v212 = vld [vmem:[#allocation4 + $0x168] sm:$0xff]
    %v213 = vld [vmem:[#allocation4 + $0x170] sm:$0xff]
    %v214 = vld [vmem:[#allocation4 + $0x178] sm:$0xff]
    %v215 = vperm.slane %v67, 2
    %216 = vmatpush.msra.mxu0 %v214
    %217 = vmatpush.msra.mxu0 %v213
    %218 = vmatpush.msra.mxu0 %v212
    %219 = vmatpush.msra.mxu0 %v211
    %220 = vmatpush.msra.mxu0 %v210
    %221 = vmatpush.msra.mxu0 %v209
    %222 = vmatpush.msra.mxu0 %v208
    %223 = vmatpush.msra.mxu0 %v207
    %224 = vmatpush.msra.mxu0 %v206
    %225 = vmatpush.msra.mxu0 %v205
    %226 = vmatpush.msra.mxu0 %v204
    %227 = vmatpush.msra.mxu0 %v203
    %228 = vmatpush.msra.mxu0 %v202
    %229 = vmatpush.msra.mxu0 %v201
    %230 = vmatpush.msra.mxu0 %v200
    %231 = vmatpush.msra.mxu0 %v199
    %232 = vmatmul.f32.gmra.mxu0 %v198
    %v233 = vpop.f32.mrf.mxu0
    %v234 = vadd.f32 %v215, %v233
    %235 = vdwg.mxu0
    %v236 = vmax.f32 %v234, 0.0
    %v237 = vld [vmem:[#allocation4 + $0x180] sm:$0xff]
    %v238 = vld [vmem:[#allocation4 + $0x188] sm:$0xff]
    %v239 = vld [vmem:[#allocation4 + $0x190] sm:$0xff]
    %v240 = vld [vmem:[#allocation4 + $0x198] sm:$0xff]
    %v241 = vld [vmem:[#allocation4 + $0x1a0] sm:$0xff]
    %v242 = vld [vmem:[#allocation4 + $0x1a8] sm:$0xff]
    %v243 = vld [vmem:[#allocation4 + $0x1b0] sm:$0xff]
    %v244 = vld [vmem:[#allocation4 + $0x1b8] sm:$0xff]
    %v245 = vld [vmem:[#allocation4 + $0x1c0] sm:$0xff]
    %v246 = vld [vmem:[#allocation4 + $0x1c8] sm:$0xff]
    %v247 = vld [vmem:[#allocation4 + $0x1d0] sm:$0xff]
    %v248 = vld [vmem:[#allocation4 + $0x1d8] sm:$0xff]
    %v249 = vld [vmem:[#allocation4 + $0x1e0] sm:$0xff]
    %v250 = vld [vmem:[#allocation4 + $0x1e8] sm:$0xff]
    %v251 = vld [vmem:[#allocation4 + $0x1f0] sm:$0xff]
    %v252 = vld [vmem:[#allocation4 + $0x1f8] sm:$0xff]
    %v253 = vperm.slane %v67, 3
    %254 = vmatpush.msra.mxu0 %v252
    %255 = vmatpush.msra.mxu0 %v251
    %256 = vmatpush.msra.mxu0 %v250
    %257 = vmatpush.msra.mxu0 %v249
    %258 = vmatpush.msra.mxu0 %v248
    %259 = vmatpush.msra.mxu0 %v247
    %260 = vmatpush.msra.mxu0 %v246
    %261 = vmatpush.msra.mxu0 %v245
    %262 = vmatpush.msra.mxu0 %v244
    %263 = vmatpush.msra.mxu0 %v243
    %264 = vmatpush.msra.mxu0 %v242
    %265 = vmatpush.msra.mxu0 %v241
    %266 = vmatpush.msra.mxu0 %v240
    %267 = vmatpush.msra.mxu0 %v239
    %268 = vmatpush.msra.mxu0 %v238
    %269 = vmatpush.msra.mxu0 %v237
    %270 = vmatmul.f32.gmra.mxu0 %v236
    %v271 = vpop.f32.mrf.mxu0
    %v272 = vadd.f32 %v253, %v271
    %273 = vdwg.mxu0
    %v274 = vsub.f32 0.0, %v272
    %v275 = vmul.f32 %v274, 1.442695
    %v276 = vpow.pop %v275
    %v277 = vadd.f32 %v276, 1.0
    %v278 = vrcp.pop %v277
    %v279 = vmul.f32 %v277, %v278
    %v280 = vsub.f32 1.0, %v279
    %v281 = vmul.f32 %v278, %v280
    %v282 = vadd.f32 %v278, %v281
    %vm283 = vweird.f32 %v277
    %vm284 = vweird.f32 %v278
    %vm285 = vmor %vm283, %vm284
    %v286 = vsel %vm285, %v278, %v282
    %v287 = vand.u32 2147483647, %v277
    %vm288 = vcmp.eq.f32.partialorder %v287, 8.507059e+37
    %v289 = vand.u32 %v277, 2147483648
    %v290 = vor.u32 1.1754944e-38, %v289
    %v291 = vsel %vm288, %v290, %v286
    %v292 = vmul.f32 1.0, %v291
    %v293 = vmul.f32 %v66, 0.05
    %v294 = vadd.f32 %v292, %v293
    %v295 = vmul.f32 %v66, %v66
    %vm296 = vcmask 31744
    %v297 = vsel %vm296, %v295, 0.0
    %298 = vadd.xlane.f32.xlu0 %v297
    %v299 = vpop.xlane.xlu0 %298
    %v300 = vadd.f32 %v299, -16.61435
    %v301 = vmul.f32 %v300, -0.5
    %302 = vst.msk [vmem:[%s5] sm:$0xff] %vm296, %v294
    %vm303 = vcmask 39968
    %304 = vst.msk [vmem:[%s5] sm:$0xff] %vm303, %v301
    %306 = vrot.lane.b32.xlu0 %v272, 1
    %v307 = vpop.permute.xlu0 %306
    %vm309 = vcmask 48168
    %310 = vst.msk [vmem:[%s5] sm:$0xff] %vm309, %v307
    // Predicated region
    $region34: #{actor_critic_forward.1} parent=1 // pred_check
      _
    $region35: #{actor_critic_forward.1} parent=1 // pred_check_branch
      %312 = sbr.rel (0) target = $region37
    $region36: #{actor_critic_forward.1} parent=1 // pred_region
      _
    $region37: #{actor_critic_forward.1} parent=1 // pred_fallthru
      _
    // Predicated region
    $region38: #{actor_critic_forward.1} parent=1 // pred_check
      _
    $region39: #{actor_critic_forward.1} parent=1 // pred_check_branch
      %314 = sbr.rel (0) target = $region41
    $region40: #{actor_critic_forward.1} parent=1 // pred_region
      _
    $region41: #{actor_critic_forward.1} parent=1 // pred_fallthru
      _
    %315 = vsyncpa [#allocation3], 1
    %316 = vsyncpa [#allocation5], 1

</llo_original>
